<compile_context>
chip_gen: v6e
topology: v6e:2x2x1
jax: 0.10.0
libtpu: 0.0.40
codegen_flags: <defaults>
</compile_context>

<pallas_src>
import jax
import jax.numpy as jnp
from jax.experimental import pallas as pl
from jax.experimental.pallas import tpu as pltpu


def _round_up(x, m):
    return ((x + m - 1) // m) * m


def _mlp_head_kernel(x_ref, w1_ref, b1_ref, w2_ref, b2_ref, o_ref):
    """grid = (row_tiles, k_tiles); K is the innermost (reduction) axis.

    The output block index depends only on i, so o_ref stays resident across
    the K axis and doubles as the f32 fc1 accumulator."""
    k = pl.program_id(1)

    @pl.when(k == 0)
    def _init():
        o_ref[...] = jnp.zeros_like(o_ref)

    # fc1 partial product for this K tile: cast the f32 x tile to bf16 on the
    # fly (no separate cast pass over HBM in the wrapper), accumulate in f32
    # directly into the resident output block.
    o_ref[...] += jnp.dot(x_ref[...].astype(w1_ref.dtype), w1_ref[...],
                          preferred_element_type=jnp.float32)

    @pl.when(k == pl.num_programs(1) - 1)
    def _finalize():
        # bias + ReLU in f32, then fc2 (bf16 operands, f32 accumulate),
        # bias + ReLU, overwrite the output block with the final result.
        h = jnp.maximum(o_ref[...] + b1_ref[...], 0.0)
        y = jnp.dot(h.astype(w2_ref.dtype), w2_ref[...],
                    preferred_element_type=jnp.float32)
        o_ref[...] = jnp.maximum(y + b2_ref[...], 0.0).astype(o_ref.dtype)


def prepare_params(fc1_w, fc1_b, fc2_w, fc2_b):
    """One-time parameter prep (outside the forward path): transpose PyTorch
    (out,in) Linear weights to (in,out) and cast to bf16; keep biases f32 and
    2D for TPU-friendly broadcasting."""
    H = fc1_w.shape[0]
    w1_t = fc1_w.T.astype(jnp.bfloat16)            # (K, H)
    w2_t = fc2_w.T.astype(jnp.bfloat16)            # (H, H)
    b1_2d = fc1_b.reshape(1, H).astype(jnp.float32)
    b2_2d = fc2_b.reshape(1, H).astype(jnp.float32)
    return w1_t, b1_2d, w2_t, b2_2d


def _pick_tk(K, tk_target):
    """Largest lane-aligned tk <= tk_target that divides K (no K padding in
    the common case). Falls back to a padded tk only if K % 128 != 0."""
    if K <= tk_target:
        return K, K
    if K % 128 == 0:
        q = K // 128
        best = 1
        for d in range(1, min(q, tk_target // 128) + 1):
            if q % d == 0:
                best = d
        tk = 128 * best
        return tk, K
    tk = tk_target
    return tk, _round_up(K, tk)


def _vmem_estimate(tm, tk, H):
    # Double-buffered x / w1 / out blocks + resident w2 / biases (x2 default
    # buffering). x blocks are f32 (cast happens in-kernel).
    return (2 * tm * tk * 4          # x
            + 2 * tk * H * 2         # w1 (bf16)
            + 2 * tm * H * 4         # out / accumulator (f32)
            + 2 * H * H * 2          # w2 (bf16)
            + 2 * 2 * H * 4)         # biases


def roi_2mlp_head_forward(x_pooled, w1_t, b1_2d, w2_t, b2_2d, *,
                          tm_target=512, tk_target=2048,
                          vmem_limit_bytes=48 * 1024 * 1024):
    """x_pooled: (R, C, P, P) float32 (NCHW RoI-pooled features).
    w1_t: (C*P*P, H) bf16, b1_2d: (1, H) f32, w2_t: (H, H) bf16, b2_2d: (1, H)
    f32 (as produced by prepare_params).  Returns (R, H) float32."""
    R = x_pooled.shape[0]
    K, H = w1_t.shape

    # Flatten like PyTorch's x.view(batch_size, -1); keep f32 (cast in-kernel).
    x2d = x_pooled.reshape(R, K)

    # ---- Tile selection -----------------------------------------------------
    tk, K_pad = _pick_tk(K, tk_target)

    tm = min(tm_target, _round_up(R, 16))
    n_row_tiles = pl.cdiv(R, tm)
    if R >= 256 and n_row_tiles < 2:
        n_row_tiles = 2                      # v7x: give both TensorCores work
    tm = min(tm, _round_up(pl.cdiv(R, n_row_tiles), 16))

    # Shrink tiles (best effort) if they would not fit the VMEM budget.
    budget = int(0.85 * vmem_limit_bytes)
    cur_tk_target = tk_target
    while _vmem_estimate(tm, tk, H) > budget and (tk > 512 or tm > 16):
        if tk > 512:
            cur_tk_target = max(512, cur_tk_target // 2)
            tk, K_pad = _pick_tk(K, cur_tk_target)
        else:
            tm = max(16, _round_up(tm // 2, 16))

    R_pad = _round_up(R, tm)

    # Per-call padding only when unavoidable (tiny R, or K not lane-aligned).
    x_in = x2d
    w1_in = w1_t
    if R_pad != R or K_pad != K:
        x_in = jnp.pad(x_in, ((0, R_pad - R), (0, K_pad - K)))
    if K_pad != K:
        w1_in = jnp.pad(w1_in, ((0, K_pad - K), (0, 0)))

    grid = (R_pad // tm, K_pad // tk)
    n_row_tiles = grid[0]

    cost = pl.CostEstimate(
        flops=int(2 * R_pad * K_pad * H + 2 * R_pad * H * H),
        transcendentals=0,
        bytes_accessed=int(
            R_pad * K_pad * 4                  # x read (f32), once
            + n_row_tiles * K_pad * H * 2      # w1 streamed once per row tile
            + H * H * 2                        # w2 once (resident)
            + 2 * H * 4                        # biases
            + R_pad * H * 4),                  # output write (f32)
    )

    grid_spec = pltpu.PrefetchScalarGridSpec(
        num_scalar_prefetch=0,
        grid=grid,
        in_specs=[
            pl.BlockSpec((tm, tk), lambda i, k: (i, k)),   # x tile (f32)
            pl.BlockSpec((tk, H), lambda i, k: (k, 0)),    # w1 tile (bf16)
            pl.BlockSpec((1, H), lambda i, k: (0, 0)),     # b1 (resident)
            pl.BlockSpec((H, H), lambda i, k: (0, 0)),     # w2 (resident)
            pl.BlockSpec((1, H), lambda i, k: (0, 0)),     # b2 (resident)
        ],
        out_specs=pl.BlockSpec((tm, H), lambda i, k: (i, 0)),
    )

    out_padded = pl.pallas_call(
        _mlp_head_kernel,
        out_shape=jax.ShapeDtypeStruct((R_pad, H), jnp.float32),
        grid_spec=grid_spec,
        compiler_params=pltpu.CompilerParams(
            dimension_semantics=("parallel", "arbitrary"),
            vmem_limit_bytes=vmem_limit_bytes,
        ),
        cost_estimate=cost,
    )(x_in, w1_in, b1_2d, w2_t, b2_2d)

    return out_padded[:R] if R_pad != R else out_padded


def _xavier_fill(key, shape):
    # Caffe2 XavierFill: uniform(-sqrt(3/fan_in), sqrt(3/fan_in)); weight is
    # (out_features, in_features) so fan_in = shape[1].
    fan_in = shape[1]
    scale = jnp.sqrt(3.0 / fan_in)
    return jax.random.uniform(key, shape, dtype=jnp.float32,
                              minval=-scale, maxval=scale)


if __name__ == "__main__":
    # Small, module-consistent shapes:
    #   num_rois=8, dim_in=4, roi_size=4  ->  flattened in-dim = 4*4*4 = 64
    #   MLP_HEAD_DIM (hidden_dim) = 32
    num_rois, dim_in, roi_size, hidden_dim = 8, 4, 4, 32
    in_dim = dim_in * roi_size ** 2

    key = jax.random.PRNGKey(0)
    k_x, k_w1, k_w2 = jax.random.split(key, 3)

    # Stand-in for roi_xform output (pooled RoI features, NCHW).
    x = jax.random.normal(k_x, (num_rois, dim_in, roi_size, roi_size),
                          dtype=jnp.float32)

    fc1_w = _xavier_fill(k_w1, (hidden_dim, in_dim))
    fc1_b = jnp.zeros((hidden_dim,), dtype=jnp.float32)   # init.constant_(0)
    fc2_w = _xavier_fill(k_w2, (hidden_dim, hidden_dim))
    fc2_b = jnp.zeros((hidden_dim,), dtype=jnp.float32)   # init.constant_(0)

    # Hoisted, one-time parameter prep (transpose + bf16 cast).
    params = prepare_params(fc1_w, fc1_b, fc2_w, fc2_b)

    out = roi_2mlp_head_forward(x, *params)
    out = jax.block_until_ready(out)

    # Pure-JAX f32 reference (same semantics as the PyTorch forward).
    # Tolerance loosened because the kernel uses bf16 MXU operands (f32 accum).
    ref = jnp.maximum(x.reshape(num_rois, -1) @ fc1_w.T + fc1_b, 0.0)
    ref = jnp.maximum(ref @ fc2_w.T + fc2_b, 0.0)
    assert out.shape == (num_rois, hidden_dim)
    assert jnp.allclose(out, ref, atol=3e-2, rtol=3e-2), \
        float(jnp.max(jnp.abs(out - ref)))

    print("KERNEL_OK")
</pallas_src>

<mosaic_0001>
module attributes {stable_mosaic.version = 11 : i64} {
  func.func @_mlp_head_kernel(%arg0: i32, %arg1: i32, %arg2: memref<16x64xf32, #tpu.memory_space<vmem>>, %arg3: memref<64x32xbf16, #tpu.memory_space<vmem>>, %arg4: memref<1x32xf32, #tpu.memory_space<vmem>>, %arg5: memref<32x32xbf16, #tpu.memory_space<vmem>>, %arg6: memref<1x32xf32, #tpu.memory_space<vmem>>, %arg7: memref<16x32xf32, #tpu.memory_space<vmem>>) attributes {dimension_semantics = [#tpu.dimension_semantics<parallel>, #tpu.dimension_semantics<arbitrary>], iteration_bounds = array<i64: 1, 1>, scalar_prefetch = 0 : i64, scratch_operands = 0 : i64, tpu.core_type = #tpu.core_type<tc>, window_params = [{transform_indices = @transform_0, window_bounds = array<i64: 16, 64>}, {transform_indices = @transform_1, window_bounds = array<i64: 64, 32>}, {pipeline_mode = #tpu.pipeline_mode<synchronous>, transform_indices = @transform_2, window_bounds = array<i64: 1, 32>}, {pipeline_mode = #tpu.pipeline_mode<synchronous>, transform_indices = @transform_3, window_bounds = array<i64: 32, 32>}, {pipeline_mode = #tpu.pipeline_mode<synchronous>, transform_indices = @transform_4, window_bounds = array<i64: 1, 32>}, {transform_indices = @transform_5, window_bounds = array<i64: 16, 32>}]} {
    %c0_i32 = arith.constant 0 : i32
    %0 = arith.cmpi eq, %arg1, %c0_i32 : i32
    %1 = arith.extui %0 : i1 to i32
    %c0_i32_0 = arith.constant 0 : i32
    %2 = arith.cmpi ne, %1, %c0_i32_0 : i32
    scf.if %2 {
      %cst_10 = arith.constant 0.000000e+00 : f32
      %13 = vector.broadcast %cst_10 : f32 to vector<16x32xf32>
      %c0_11 = arith.constant 0 : index
      %c0_12 = arith.constant 0 : index
      %14 = vector.load %arg7[%c0_11, %c0_12] : memref<16x32xf32, #tpu.memory_space<vmem>>, vector<16x32xf32>
      tpu.vector_store %arg7[%c0_11, %c0_12], %13 {strides = array<i32>} : memref<16x32xf32, #tpu.memory_space<vmem>>, vector<16x32xf32>,
    } else {
    }
    %c0 = arith.constant 0 : index
    %c0_1 = arith.constant 0 : index
    %3 = vector.load %arg7[%c0, %c0_1] : memref<16x32xf32, #tpu.memory_space<vmem>>, vector<16x32xf32>
    %c0_2 = arith.constant 0 : index
    %c0_3 = arith.constant 0 : index
    %4 = vector.load %arg2[%c0_2, %c0_3] : memref<16x64xf32, #tpu.memory_space<vmem>>, vector<16x64xf32>
    %5 = arith.truncf %4 : vector<16x64xf32> to vector<16x64xbf16>
    %c0_4 = arith.constant 0 : index
    %c0_5 = arith.constant 0 : index
    %6 = vector.load %arg3[%c0_4, %c0_5] : memref<64x32xbf16, #tpu.memory_space<vmem>>, vector<64x32xbf16>
    %cst = arith.constant dense<0.000000e+00> : vector<16x32xf32>
    %7 = tpu.matmul %5, %6, %cst {dimension_numbers = #tpu.dot_dimension_numbers<[1], [0], [0], [1], [0, 0, 1, 1], [], []>} : vector<16x64xbf16>, vector<64x32xbf16>, vector<16x32xf32> -> vector<16x32xf32>
    %8 = arith.addf %3, %7 : vector<16x32xf32>
    %c0_6 = arith.constant 0 : index
    %c0_7 = arith.constant 0 : index
    %9 = vector.load %arg7[%c0_6, %c0_7] : memref<16x32xf32, #tpu.memory_space<vmem>>, vector<16x32xf32>
    tpu.vector_store %arg7[%c0_6, %c0_7], %8 {strides = array<i32>} : memref<16x32xf32, #tpu.memory_space<vmem>>, vector<16x32xf32>,
    %c0_i32_8 = arith.constant 0 : i32
    %10 = arith.cmpi eq, %arg1, %c0_i32_8 : i32
    %11 = arith.extui %10 : i1 to i32
    %c0_i32_9 = arith.constant 0 : i32
    %12 = arith.cmpi ne, %11, %c0_i32_9 : i32
    scf.if %12 {
      %c0_10 = arith.constant 0 : index
      %c0_11 = arith.constant 0 : index
      %13 = vector.load %arg7[%c0_10, %c0_11] : memref<16x32xf32, #tpu.memory_space<vmem>>, vector<16x32xf32>
      %c0_12 = arith.constant 0 : index
      %c0_13 = arith.constant 0 : index
      %14 = vector.load %arg4[%c0_12, %c0_13] : memref<1x32xf32, #tpu.memory_space<vmem>>, vector<1x32xf32>
      %15 = vector.broadcast %14 : vector<1x32xf32> to vector<16x32xf32>
      %16 = arith.addf %13, %15 : vector<16x32xf32>
      %cst_14 = arith.constant 0.000000e+00 : f32
      %17 = vector.broadcast %cst_14 : f32 to vector<16x32xf32>
      %18 = arith.maximumf %16, %17 : vector<16x32xf32>
      %19 = arith.truncf %18 : vector<16x32xf32> to vector<16x32xbf16>
      %c0_15 = arith.constant 0 : index
      %c0_16 = arith.constant 0 : index
      %20 = vector.load %arg5[%c0_15, %c0_16] : memref<32x32xbf16, #tpu.memory_space<vmem>>, vector<32x32xbf16>
      %cst_17 = arith.constant dense<0.000000e+00> : vector<16x32xf32>
      %21 = tpu.matmul %19, %20, %cst_17 {dimension_numbers = #tpu.dot_dimension_numbers<[1], [0], [0], [1], [0, 0, 1, 1], [], []>} : vector<16x32xbf16>, vector<32x32xbf16>, vector<16x32xf32> -> vector<16x32xf32>
      %c0_18 = arith.constant 0 : index
      %c0_19 = arith.constant 0 : index
      %22 = vector.load %arg6[%c0_18, %c0_19] : memref<1x32xf32, #tpu.memory_space<vmem>>, vector<1x32xf32>
      %23 = vector.broadcast %22 : vector<1x32xf32> to vector<16x32xf32>
      %24 = arith.addf %21, %23 : vector<16x32xf32>
      %cst_20 = arith.constant 0.000000e+00 : f32
      %25 = vector.broadcast %cst_20 : f32 to vector<16x32xf32>
      %26 = arith.maximumf %24, %25 : vector<16x32xf32>
      %c0_21 = arith.constant 0 : index
      %c0_22 = arith.constant 0 : index
      %27 = vector.load %arg7[%c0_21, %c0_22] : memref<16x32xf32, #tpu.memory_space<vmem>>, vector<16x32xf32>
      tpu.vector_store %arg7[%c0_21, %c0_22], %26 {strides = array<i32>} : memref<16x32xf32, #tpu.memory_space<vmem>>, vector<16x32xf32>,
    } else {
    }
    return
  }
  func.func @transform_0(%arg0: i32, %arg1: i32) -> (i32, i32) {
    %c0_i32 = arith.constant 0 : i32
    return %arg0, %arg1 : i32, i32
  }
  func.func @transform_1(%arg0: i32, %arg1: i32) -> (i32, i32) {
    %c0_i32 = arith.constant 0 : i32
    %c0_i32_0 = arith.constant 0 : i32
    return %arg1, %c0_i32 : i32, i32
  }
  func.func @transform_2(%arg0: i32, %arg1: i32) -> (i32, i32) {
    %c0_i32 = arith.constant 0 : i32
    %c0_i32_0 = arith.constant 0 : i32
    %c0_i32_1 = arith.constant 0 : i32
    return %c0_i32, %c0_i32_0 : i32, i32
  }
  func.func @transform_3(%arg0: i32, %arg1: i32) -> (i32, i32) {
    %c0_i32 = arith.constant 0 : i32
    %c0_i32_0 = arith.constant 0 : i32
    %c0_i32_1 = arith.constant 0 : i32
    return %c0_i32, %c0_i32_0 : i32, i32
  }
  func.func @transform_4(%arg0: i32, %arg1: i32) -> (i32, i32) {
    %c0_i32 = arith.constant 0 : i32
    %c0_i32_0 = arith.constant 0 : i32
    %c0_i32_1 = arith.constant 0 : i32
    return %c0_i32, %c0_i32_0 : i32, i32
  }
  func.func @transform_5(%arg0: i32, %arg1: i32) -> (i32, i32) {
    %c0_i32 = arith.constant 0 : i32
    %c0_i32_0 = arith.constant 0 : i32
    return %arg0, %c0_i32 : i32, i32
  }
}

</mosaic_0001>

<llo_original>
// kernel: tpu_custom_call.1
$region0: #{tpu_custom_call.1}
  #allocation0 [shape = 'u32[]', space=smem, size = 0x4, offset = 0x4, fixed_abs, tag = 'smem constant byte address 0x4 - core index']
  #allocation1 [shape = 'u32[144,128]{1,0:T(1,128)}', space=vmem, size = 0x12000, scoped, tag = 'internal scratch']
  %s0 = inlined_call_operand.vmem [shape: f32[16,64], index: 0, kind: input, shape index: {}]
  %s1 = inlined_call_operand.vmem [shape: bf16[64,32], index: 1, kind: input, shape index: {}]
  %s2 = inlined_call_operand.vmem [shape: f32[1,32], index: 2, kind: input, shape index: {}]
  %s3 = inlined_call_operand.vmem [shape: bf16[32,32], index: 3, kind: input, shape index: {}]
  %s4 = inlined_call_operand.vmem [shape: f32[1,32], index: 4, kind: input, shape index: {}]
  %s5 = inlined_call_operand.hbm [shape: f32[16,32], index: 5, kind: output, shape index: {}]
  %s6 = sld [smem:[#allocation0]]
  $region38: #{tpu_custom_call.1} parent=0
    _
  %s8 = ssub.s32 1, %s6
  %s9 = scalar_select 0, %s8, %s6
  $region1: #{tpu_custom_call.1} parent=0
    #allocation2 [shape = 'u8[8192]{0}', space=vmem, size = 0x2000, scoped, tag = 'output window, operand 0, single buffered']
    #allocation3 [shape = 's32[1]{0}', space=sflag, size = 0x4, scoped, tag = 'scoped memory for tpu_custom_call.1']
    %10 = vsyncpa [#allocation3], 0
    // Predicated region
    $region2: #{tpu_custom_call.1} parent=1 // pred_check
      _
    $region3: #{tpu_custom_call.1} parent=1 // pred_check_branch
      %12 = sbr.rel (0) target = $region5
    $region4: #{tpu_custom_call.1} parent=1 // pred_region
      _
    $region5: #{tpu_custom_call.1} parent=1 // pred_fallthru
      _
    // Predicated region
    $region6: #{tpu_custom_call.1} parent=1 // pred_check
      _
    $region7: #{tpu_custom_call.1} parent=1 // pred_check_branch
      %14 = sbr.rel (0) target = $region9
    $region8: #{tpu_custom_call.1} parent=1 // pred_region
      _
    $region9: #{tpu_custom_call.1} parent=1 // pred_fallthru
      _
    // Predicated region
    $region10: #{tpu_custom_call.1} parent=1 // pred_check
      _
    $region11: #{tpu_custom_call.1} parent=1 // pred_check_branch
      %16 = sbr.rel (0) target = $region13
    $region12: #{tpu_custom_call.1} parent=1 // pred_region
      _
    $region13: #{tpu_custom_call.1} parent=1 // pred_fallthru
      _
    // Predicated region
    $region14: #{tpu_custom_call.1} parent=1 // pred_check
      _
    $region15: #{tpu_custom_call.1} parent=1 // pred_check_branch
      %18 = sbr.rel (0) target = $region17
    $region16: #{tpu_custom_call.1} parent=1 // pred_region
      _
    $region17: #{tpu_custom_call.1} parent=1 // pred_fallthru
      _
    // Predicated region
    $region18: #{tpu_custom_call.1} parent=1 // pred_check
      _
    $region19: #{tpu_custom_call.1} parent=1 // pred_check_branch
      %20 = sbr.rel (0) target = $region21
    $region20: #{tpu_custom_call.1} parent=1 // pred_region
      _
    $region21: #{tpu_custom_call.1} parent=1 // pred_fallthru
      _
    %p22 = scmp.eq.s32.totalorder 0, 0
    // Predicated region
    $region22: #{tpu_custom_call.1} parent=1 // pred_check
      %p23 = pneg %p22
    $region23: #{tpu_custom_call.1} parent=1 // pred_check_branch
      %25 = sbr.rel (%p23) target = $region25
    $region24: #{tpu_custom_call.1} parent=1 // pred_region
      %vm26 = vcmask 261120
      %27 = vst.msk [vmem:[#allocation2] sm:$0xff] %vm26, 0.0
      %28 = vst.msk [vmem:[#allocation2 + $0x8] sm:$0xff] %vm26, 0.0
    $region25: #{tpu_custom_call.1} parent=1 // pred_fallthru
      _
    %v29 = vld [vmem:[#allocation2] sm:$0xff]
    %v30 = vld [vmem:[#allocation2 + $0x8] sm:$0xff]
    %v31 = vld [vmem:[%s0] sm:$0xff]
    %v32 = vld [vmem:[%s0 + $0x8] sm:$0xff]
    %v33 = vpack.c.bf16 %v32, %v31
    %v34 = vld [vmem:[%s1] sm:$0xf]
    %v35 = vld [vmem:[%s1 + $0x4] sm:$0xf]
    %v36 = vld [vmem:[%s1 + $0x8] sm:$0xf]
    %v37 = vld [vmem:[%s1 + $0xc] sm:$0xf]
    %v38 = vld [vmem:[%s1 + $0x10] sm:$0xf]
    %v39 = vld [vmem:[%s1 + $0x14] sm:$0xf]
    %v40 = vld [vmem:[%s1 + $0x18] sm:$0xf]
    %v41 = vld [vmem:[%s1 + $0x1c] sm:$0xf]
    %v50 = vunpack.c.l.b16 %v34
    %v51 = vunpack.c.l.b16 %v35
    %v52 = vunpack.c.l.b16 %v36
    %v53 = vunpack.c.l.b16 %v37
    %v54 = vunpack.c.l.b16 %v38
    %v55 = vunpack.c.l.b16 %v39
    %v56 = vunpack.c.l.b16 %v40
    %v57 = vunpack.c.l.b16 %v41
    %v58 = vpack.c.b16 %v51, %v50
    %v59 = vpack.c.b16 %v53, %v52
    %v60 = vpack.c.b16 %v55, %v54
    %v61 = vpack.c.b16 %v57, %v56
    %vm66 = vcmask 523264
    %v68 = vsel %vm66, %v33, 0
    %70 = vmatprep.subr.bf16.mxu0 0
    %71 = vmatpush1.bf16.msra.mxu0 0
    %72 = vmatprep.subr.bf16.mxu0 0
    %73 = vmatpush1.bf16.msra.mxu0 0
    %74 = vmatprep.subr.bf16.mxu0 0
    %75 = vmatpush1.bf16.msra.mxu0 0
    %76 = vmatprep.subr.bf16.mxu0 0
    %77 = vmatpush1.bf16.msra.mxu0 0
    %78 = vmatprep.subr.bf16.mxu0 0
    %79 = vmatpush1.bf16.msra.mxu0 %v61
    %80 = vmatprep.subr.bf16.mxu0 0
    %81 = vmatpush1.bf16.msra.mxu0 %v60
    %82 = vmatprep.subr.bf16.mxu0 0
    %83 = vmatpush1.bf16.msra.mxu0 %v59
    %84 = vmatprep.subr.bf16.mxu0 0
    %85 = vmatpush1.bf16.msra.mxu0 %v58
    %86 = vmatprep.subr.bf16.mxu0 0
    %87 = vmatpush2.bf16.msra.mxu0 0
    %88 = vmatprep.subr.bf16.mxu0 0
    %89 = vmatpush2.bf16.msra.mxu0 0
    %90 = vmatprep.subr.bf16.mxu0 0
    %91 = vmatpush2.bf16.msra.mxu0 0
    %92 = vmatprep.subr.bf16.mxu0 0
    %93 = vmatpush2.bf16.msra.mxu0 0
    %94 = vmatprep.subr.bf16.mxu0 0
    %95 = vmatpush2.bf16.msra.mxu0 0
    %96 = vmatprep.subr.bf16.mxu0 0
    %97 = vmatpush2.bf16.msra.mxu0 0
    %98 = vmatprep.subr.bf16.mxu0 0
    %99 = vmatpush2.bf16.msra.mxu0 0
    %100 = vmatprep.subr.bf16.mxu0 0
    %101 = vmatpush2.bf16.msra.mxu0 0
    %102 = vmatprep.mubr.bf16.mxu0 0
    %103 = vmatmul.mubr.bf16.gmra.mxu0 %v68
    %v104 = vpop.f32.mrf.mxu0
    %v105 = vadd.f32 0.0, %v104
    %v106 = vpop.f32.mrf.mxu0
    %v107 = vpop.f32.mrf.mxu0
    %v108 = vadd.f32 0.0, %v107
    %v109 = vpop.f32.mrf.mxu0
    %110 = vdwg.mxu0
    %v111 = vadd.f32 %v29, %v105
    %v112 = vadd.f32 %v30, %v108
    %vm113 = vcmask 261120
    %114 = vst.msk [vmem:[#allocation2] sm:$0xff] %vm113, %v111
    %115 = vst.msk [vmem:[#allocation2 + $0x8] sm:$0xff] %vm113, %v112
    // Predicated region
    $region26: #{tpu_custom_call.1} parent=1 // pred_check
      %p116 = pneg %p22
    $region27: #{tpu_custom_call.1} parent=1 // pred_check_branch
      %118 = sbr.rel (%p116) target = $region29
    $region28: #{tpu_custom_call.1} parent=1 // pred_region
      %v119 = vld [vmem:[#allocation2] sm:$0xff]
      %v120 = vld [vmem:[#allocation2 + $0x8] sm:$0xff]
      %v121 = vld [vmem:[%s2] sm:$0x1]
      %v123 = vlaneseq
      %v124 = vshrl.u32 %v123, 7
      %v125 = vsub.s32 0, %v124
      %v126 = vrot.slane %v121, %v125
      %v128 = vadd.f32 %v119, %v126
      %v129 = vadd.f32 %v120, %v126
      %v130 = vmax.f32 %v128, 0.0
      %v131 = vmax.f32 %v129, 0.0
      %v132 = vpack.c.bf16 %v131, %v130
      %v133 = vld [vmem:[%s3] sm:$0xf]
      %v134 = vld [vmem:[%s3 + $0x4] sm:$0xf]
      %v135 = vld [vmem:[%s3 + $0x8] sm:$0xf]
      %v136 = vld [vmem:[%s3 + $0xc] sm:$0xf]
      %v137 = vld [vmem:[%s4] sm:$0x1]
      %v139 = vlaneseq
      %v140 = vshrl.u32 %v139, 7
      %v141 = vsub.s32 0, %v140
      %v142 = vrot.slane %v137, %v141
      %v148 = vunpack.c.l.b16 %v133
      %v149 = vunpack.c.l.b16 %v134
      %v150 = vunpack.c.l.b16 %v135
      %v151 = vunpack.c.l.b16 %v136
      %v152 = vpack.c.b16 %v149, %v148
      %v153 = vpack.c.b16 %v151, %v150
      %v157 = vsel %vm113, %v132, 0
      %159 = vmatprep.subr.bf16.mxu0 0
      %160 = vmatpush1.bf16.msra.mxu0 0
      %161 = vmatprep.subr.bf16.mxu0 0
      %162 = vmatpush1.bf16.msra.mxu0 0
      %163 = vmatprep.subr.bf16.mxu0 0
      %164 = vmatpush1.bf16.msra.mxu0 0
      %165 = vmatprep.subr.bf16.mxu0 0
      %166 = vmatpush1.bf16.msra.mxu0 0
      %167 = vmatprep.subr.bf16.mxu0 0
      %168 = vmatpush1.bf16.msra.mxu0 0
      %169 = vmatprep.subr.bf16.mxu0 0
      %170 = vmatpush1.bf16.msra.mxu0 0
      %171 = vmatprep.subr.bf16.mxu0 0
      %172 = vmatpush1.bf16.msra.mxu0 %v153
      %173 = vmatprep.subr.bf16.mxu0 0
      %174 = vmatpush1.bf16.msra.mxu0 %v152
      %175 = vmatprep.subr.bf16.mxu0 0
      %176 = vmatpush2.bf16.msra.mxu0 0
      %177 = vmatprep.subr.bf16.mxu0 0
      %178 = vmatpush2.bf16.msra.mxu0 0
      %179 = vmatprep.subr.bf16.mxu0 0
      %180 = vmatpush2.bf16.msra.mxu0 0
      %181 = vmatprep.subr.bf16.mxu0 0
      %182 = vmatpush2.bf16.msra.mxu0 0
      %183 = vmatprep.subr.bf16.mxu0 0
      %184 = vmatpush2.bf16.msra.mxu0 0
      %185 = vmatprep.subr.bf16.mxu0 0
      %186 = vmatpush2.bf16.msra.mxu0 0
      %187 = vmatprep.subr.bf16.mxu0 0
      %188 = vmatpush2.bf16.msra.mxu0 0
      %189 = vmatprep.subr.bf16.mxu0 0
      %190 = vmatpush2.bf16.msra.mxu0 0
      %191 = vmatprep.mubr.bf16.mxu0 0
      %192 = vmatmul.mubr.bf16.gmra.mxu0 %v157
      %v193 = vpop.f32.mrf.mxu0
      %v194 = vadd.f32 %v142, %v193
      %v195 = vpop.f32.mrf.mxu0
      %v196 = vpop.f32.mrf.mxu0
      %v197 = vadd.f32 %v142, %v196
      %v198 = vpop.f32.mrf.mxu0
      %199 = vdwg.mxu0
      %v200 = vmax.f32 %v194, 0.0
      %v201 = vmax.f32 %v197, 0.0
      %202 = vst.msk [vmem:[#allocation2] sm:$0xff] %vm113, %v200
      %203 = vst.msk [vmem:[#allocation2 + $0x8] sm:$0xff] %vm113, %v201
    $region29: #{tpu_custom_call.1} parent=1 // pred_fallthru
      _
    // Predicated region
    $region30: #{tpu_custom_call.1} parent=1 // pred_check
      _
    $region31: #{tpu_custom_call.1} parent=1 // pred_check_branch
      %205 = sbr.rel (0) target = $region33
    $region32: #{tpu_custom_call.1} parent=1 // pred_region
      %s207 = ssub.s32 256, 256
      %208 = vsyncadd [#allocation3], %s207
      %s209 = sshll.u32 [#allocation2], 4
      %s210 = int_to_ptr.vmem [resolvable:$true] %s209
      %215 = dma.vmem_to_hbm [thread:$0]  %s210, 256, %s5, [#allocation3], 128, 128, 8
    $region33: #{tpu_custom_call.1} parent=1 // pred_fallthru
      _
    // Predicated region
    $region34: #{tpu_custom_call.1} parent=1 // pred_check
      _
    $region35: #{tpu_custom_call.1} parent=1 // pred_check_branch
      %217 = sbr.rel (0) target = $region37
    $region36: #{tpu_custom_call.1} parent=1 // pred_region
      %218 = dma.done [#allocation3], 256
    $region37: #{tpu_custom_call.1} parent=1 // pred_fallthru
      _
    %219 = vsyncpa [#allocation3], 1

</llo_original>
